<compile_context>
chip_gen: v7x
topology: tpu7x:2x2x1
jax: 0.10.0
libtpu: 0.0.40
codegen_flags: <defaults>
</compile_context>

<pallas_src>
import functools

import jax
import jax.numpy as jnp
from jax.experimental import pallas as pl
from jax.experimental.pallas import tpu as pltpu


def conv_stats_kernel(w_ref, pe_ref, po_ref, ye_ref, yo_ref, stats_ref):
    """Conv as one (Cout,K)@(K,TM) GEMM per W-parity + per-tile BN partials."""
    w = w_ref[...]                                       # (Cout, K) bf16
    ye = jnp.dot(w, pe_ref[...], preferred_element_type=jnp.float32)
    yo = jnp.dot(w, po_ref[...], preferred_element_type=jnp.float32)
    ye_ref[...] = ye                                     # (Cout, TM) f32
    yo_ref[...] = yo
    # Single-pass BN statistics: per-channel sum and sum-of-squares (lane
    # reductions on the XLU); reduced across tiles in the wrapper.
    s = jnp.sum(ye, axis=1, keepdims=True) + jnp.sum(yo, axis=1, keepdims=True)
    sq = (jnp.sum(ye * ye, axis=1, keepdims=True)
          + jnp.sum(yo * yo, axis=1, keepdims=True))
    stats_ref[:, 0:1] = s
    stats_ref[:, 1:2] = sq


def bn_act_pool_kernel(ss_ref, ye_ref, yo_ref, o_ref, *, slope):
    """BN affine + leaky_relu + avg_pool(1,2) on lane-major tiles."""
    scale = ss_ref[:, 0:1]                               # (Cout, 1) f32
    shift = ss_ref[:, 1:2]
    ye = ye_ref[...] * scale + shift
    yo = yo_ref[...] * scale + shift
    ye = jnp.where(ye > 0, ye, slope * ye)
    yo = jnp.where(yo > 0, yo, slope * yo)
    o_ref[...] = (0.5 * (ye + yo)).astype(o_ref.dtype)


def _pick_block_m(mh):
    for t in (2048, 1024, 512, 256, 128):
        if mh % t == 0:
            return t
    return mh


def conv_block_forward(x_nchw, w_oihw, gamma, beta, *, eps=1e-5, slope=0.01,
                       block_m=None):
    """PyTorch-equivalent ConvBlock.forward. Input NCHW, output NCHW."""
    N, Cin, H, W = x_nchw.shape
    Cout, Cin2, kh, kw = w_oihw.shape
    assert Cin == Cin2 and kh % 2 == 1 and kw % 2 == 1
    assert W % 2 == 0
    ph, pw = kh // 2, kw // 2
    Wout = W // 2
    Mh = N * H * Wout                    # number of pooled output positions
    K = kh * kw * Cin
    if block_m is None:
        block_m = _pick_block_m(Mh)
    assert Mh % block_m == 0, (Mh, block_m)
    n_tiles = Mh // block_m

    # ---- Glue: im2col in bf16 with columns split by W parity ---------------
    # TODO(synk): at production scale move the patch/halo extraction in-kernel
    # (manual DMA / overlapped index maps) to avoid the kh*kw HBM expansion of
    # wrapper-side im2col; kept as glue here so the kernel is a pure lane-major
    # GEMM (bf16 already halves the extra DMA bytes vs the old f32 pad copy).
    x_pad = jnp.pad(x_nchw, ((0, 0), (0, 0), (ph, ph), (pw, pw)))
    taps = [x_pad[:, :, dh:dh + H, dw:dw + W]
            for dh in range(kh) for dw in range(kw)]      # each (N,Cin,H,W)
    p = jnp.stack(taps, axis=0)                           # (kh*kw,N,Cin,H,W)
    p = jnp.transpose(p, (0, 2, 1, 3, 4)).reshape(K, N, H, W)
    p_even = p[..., 0::2].reshape(K, Mh).astype(jnp.bfloat16)
    p_odd = p[..., 1::2].reshape(K, Mh).astype(jnp.bfloat16)
    # Weight as (Cout, K) with K ordered (dh, dw, ci) to match the patches.
    w_mat = jnp.transpose(w_oihw, (0, 2, 3, 1)).reshape(Cout, K)
    w_mat = w_mat.astype(jnp.bfloat16)

    cparams = pltpu.CompilerParams(
        dimension_semantics=("parallel",),       # v7x: split tiles over 2 TCs
        vmem_limit_bytes=64 * 1024 * 1024)

    # ---- Pass 1: conv GEMM (f32 accumulation) + per-tile BN partials -------
    ye, yo, stats = pl.pallas_call(
        conv_stats_kernel,
        grid=(n_tiles,),
        in_specs=[
            pl.BlockSpec((Cout, K), lambda i: (0, 0)),
            pl.BlockSpec((K, block_m), lambda i: (0, i)),
            pl.BlockSpec((K, block_m), lambda i: (0, i)),
        ],
        out_specs=(
            pl.BlockSpec((Cout, block_m), lambda i: (0, i)),
            pl.BlockSpec((Cout, block_m), lambda i: (0, i)),
            pl.BlockSpec((Cout, 2), lambda i: (i, 0)),
        ),
        out_shape=(
            jax.ShapeDtypeStruct((Cout, Mh), jnp.float32),
            jax.ShapeDtypeStruct((Cout, Mh), jnp.float32),
            jax.ShapeDtypeStruct((n_tiles * Cout, 2), jnp.float32),
        ),
        compiler_params=cparams,
    )(w_mat, p_even, p_odd)

    # ---- Glue: reduce partials -> BN scale/shift (training-mode stats) -----
    stats = stats.reshape(n_tiles, Cout, 2)
    count = jnp.float32(N * H * W)
    mean = jnp.sum(stats[:, :, 0], axis=0) / count
    var = jnp.maximum(jnp.sum(stats[:, :, 1], axis=0) / count - mean * mean,
                      0.0)
    scale = gamma.astype(jnp.float32) * jax.lax.rsqrt(var + eps)
    shift = beta.astype(jnp.float32) - mean * scale
    ss = jnp.stack([scale, shift], axis=1)                # (Cout, 2)

    # ---- Pass 2: BN affine + leaky_relu + avg_pool(1,2) --------------------
    out_flat = pl.pallas_call(
        functools.partial(bn_act_pool_kernel, slope=slope),
        grid=(n_tiles,),
        in_specs=[
            pl.BlockSpec((Cout, 2), lambda i: (0, 0)),
            pl.BlockSpec((Cout, block_m), lambda i: (0, i)),
            pl.BlockSpec((Cout, block_m), lambda i: (0, i)),
        ],
        out_specs=pl.BlockSpec((Cout, block_m), lambda i: (0, i)),
        out_shape=jax.ShapeDtypeStruct((Cout, Mh), jnp.float32),
        compiler_params=cparams,
    )(ss, ye, yo)

    out = out_flat.reshape(Cout, N, H, Wout)
    return jnp.transpose(out, (1, 0, 2, 3))               # back to NCHW


def conv_block_reference(x_nchw, w_oihw, gamma, beta, eps=1e-5, slope=0.01):
    """Pure-JAX f32 reference (mirrors the PyTorch module in training mode)."""
    kh, kw = w_oihw.shape[2], w_oihw.shape[3]
    y = jax.lax.conv_general_dilated(
        x_nchw, w_oihw, window_strides=(1, 1),
        padding=((kh // 2, kh // 2), (kw // 2, kw // 2)),
        dimension_numbers=('NCHW', 'OIHW', 'NCHW'))
    mean = jnp.mean(y, axis=(0, 2, 3), keepdims=True)
    var = jnp.mean((y - mean) ** 2, axis=(0, 2, 3), keepdims=True)
    y = (y - mean) / jnp.sqrt(var + eps) * gamma.reshape(1, -1, 1, 1) \
        + beta.reshape(1, -1, 1, 1)
    y = jnp.where(y > 0, y, slope * y)
    return 0.5 * (y[..., 0::2] + y[..., 1::2])             # avg_pool2d (1, 2)


if __name__ == "__main__":
    # Small shapes consistent with the module: in_channels=4, out_channels=8,
    # kernel_size=(3, 3), input (N, C, H, W) = (2, 4, 16, 16).
    key = jax.random.PRNGKey(0)
    kx, kw_ = jax.random.split(key)
    N, Cin, H, W = 2, 4, 16, 16
    Cout, kh, kw = 8, 3, 3

    x = jax.random.normal(kx, (N, Cin, H, W), dtype=jnp.float32)
    # init_layer(conv): deterministic synthetic weights (Xavier-like scale).
    w = jax.random.normal(kw_, (Cout, Cin, kh, kw), dtype=jnp.float32) * 0.1
    # init_bn: weight = 1, bias = 0.
    gamma = jnp.ones((Cout,), dtype=jnp.float32)
    beta = jnp.zeros((Cout,), dtype=jnp.float32)
    # TODO(synk): BatchNorm running-stat momentum update is a training side
    # effect that does not affect the forward output; it is not modelled here.

    # block_m=128 forces a multi-tile grid (2 tiles) to exercise the pipeline.
    fwd = jax.jit(functools.partial(conv_block_forward, block_m=128))
    out = jax.block_until_ready(fwd(x, w, gamma, beta))

    ref = conv_block_reference(x, w, gamma, beta)
    assert out.shape == (N, Cout, H, W // 2), out.shape
    # bf16 MXU operands (f32 accumulation) -> slightly looser tolerance vs the
    # pure-f32 reference.
    err = float(jnp.max(jnp.abs(out - ref)))
    assert jnp.allclose(out, ref, atol=3e-2, rtol=3e-2), err

    print("KERNEL_OK")
</pallas_src>

<mosaic_0001>
module attributes {stable_mosaic.version = 11 : i64} {
  func.func @conv_stats_kernel(%arg0: i32, %arg1: memref<8x36xbf16, #tpu.memory_space<vmem>>, %arg2: memref<36x128xbf16, #tpu.memory_space<vmem>>, %arg3: memref<36x128xbf16, #tpu.memory_space<vmem>>, %arg4: memref<8x128xf32, #tpu.memory_space<vmem>>, %arg5: memref<8x128xf32, #tpu.memory_space<vmem>>, %arg6: memref<8x2xf32, #tpu.memory_space<vmem>>) attributes {dimension_semantics = [#tpu.dimension_semantics<parallel>], iteration_bounds = array<i64: 2>, scalar_prefetch = 0 : i64, scratch_operands = 0 : i64, tpu.core_type = #tpu.core_type<tc>, window_params = [{pipeline_mode = #tpu.pipeline_mode<synchronous>, transform_indices = @transform_0, window_bounds = array<i64: 8, 36>}, {transform_indices = @transform_1, window_bounds = array<i64: 36, 128>}, {transform_indices = @transform_2, window_bounds = array<i64: 36, 128>}, {transform_indices = @transform_3, window_bounds = array<i64: 8, 128>}, {transform_indices = @transform_4, window_bounds = array<i64: 8, 128>}, {transform_indices = @transform_5, window_bounds = array<i64: 8, 2>}]} {
    %c0 = arith.constant 0 : index
    %c0_0 = arith.constant 0 : index
    %0 = vector.load %arg1[%c0, %c0_0] : memref<8x36xbf16, #tpu.memory_space<vmem>>, vector<8x36xbf16>
    %c0_1 = arith.constant 0 : index
    %c0_2 = arith.constant 0 : index
    %1 = vector.load %arg2[%c0_1, %c0_2] : memref<36x128xbf16, #tpu.memory_space<vmem>>, vector<36x128xbf16>
    %cst = arith.constant dense<0.000000e+00> : vector<8x128xf32>
    %2 = tpu.matmul %0, %1, %cst {dimension_numbers = #tpu.dot_dimension_numbers<[1], [0], [0], [1], [0, 0, 1, 1], [], []>} : vector<8x36xbf16>, vector<36x128xbf16>, vector<8x128xf32> -> vector<8x128xf32>
    %c0_3 = arith.constant 0 : index
    %c0_4 = arith.constant 0 : index
    %3 = vector.load %arg3[%c0_3, %c0_4] : memref<36x128xbf16, #tpu.memory_space<vmem>>, vector<36x128xbf16>
    %cst_5 = arith.constant dense<0.000000e+00> : vector<8x128xf32>
    %4 = tpu.matmul %0, %3, %cst_5 {dimension_numbers = #tpu.dot_dimension_numbers<[1], [0], [0], [1], [0, 0, 1, 1], [], []>} : vector<8x36xbf16>, vector<36x128xbf16>, vector<8x128xf32> -> vector<8x128xf32>
    %c0_6 = arith.constant 0 : index
    %c0_7 = arith.constant 0 : index
    %5 = vector.load %arg4[%c0_6, %c0_7] : memref<8x128xf32, #tpu.memory_space<vmem>>, vector<8x128xf32>
    tpu.vector_store %arg4[%c0_6, %c0_7], %2 {strides = array<i32>} : memref<8x128xf32, #tpu.memory_space<vmem>>, vector<8x128xf32>,
    %c0_8 = arith.constant 0 : index
    %c0_9 = arith.constant 0 : index
    %6 = vector.load %arg5[%c0_8, %c0_9] : memref<8x128xf32, #tpu.memory_space<vmem>>, vector<8x128xf32>
    tpu.vector_store %arg5[%c0_8, %c0_9], %4 {strides = array<i32>} : memref<8x128xf32, #tpu.memory_space<vmem>>, vector<8x128xf32>,
    %cst_10 = arith.constant dense<0.000000e+00> : vector<8xf32>
    %7 = vector.multi_reduction <add>, %2, %cst_10 [1] : vector<8x128xf32> to vector<8xf32>
    %8 = vector.shape_cast %7 : vector<8xf32> to vector<8x1xf32>
    %cst_11 = arith.constant dense<0.000000e+00> : vector<8xf32>
    %9 = vector.multi_reduction <add>, %4, %cst_11 [1] : vector<8x128xf32> to vector<8xf32>
    %10 = vector.shape_cast %9 : vector<8xf32> to vector<8x1xf32>
    %11 = arith.addf %8, %10 : vector<8x1xf32>
    %12 = arith.mulf %2, %2 : vector<8x128xf32>
    %cst_12 = arith.constant dense<0.000000e+00> : vector<8xf32>
    %13 = vector.multi_reduction <add>, %12, %cst_12 [1] : vector<8x128xf32> to vector<8xf32>
    %14 = vector.shape_cast %13 : vector<8xf32> to vector<8x1xf32>
    %15 = arith.mulf %4, %4 : vector<8x128xf32>
    %cst_13 = arith.constant dense<0.000000e+00> : vector<8xf32>
    %16 = vector.multi_reduction <add>, %15, %cst_13 [1] : vector<8x128xf32> to vector<8xf32>
    %17 = vector.shape_cast %16 : vector<8xf32> to vector<8x1xf32>
    %18 = arith.addf %14, %17 : vector<8x1xf32>
    %c0_14 = arith.constant 0 : index
    %c0_15 = arith.constant 0 : index
    %19 = vector.load %arg6[%c0_14, %c0_15] : memref<8x2xf32, #tpu.memory_space<vmem>>, vector<8x1xf32>
    tpu.vector_store %arg6[%c0_14, %c0_15], %11 {strides = array<i32>} : memref<8x2xf32, #tpu.memory_space<vmem>>, vector<8x1xf32>,
    %c0_16 = arith.constant 0 : index
    %c1 = arith.constant 1 : index
    %20 = vector.load %arg6[%c0_16, %c1] : memref<8x2xf32, #tpu.memory_space<vmem>>, vector<8x1xf32>
    tpu.vector_store %arg6[%c0_16, %c1], %18 {strides = array<i32>} : memref<8x2xf32, #tpu.memory_space<vmem>>, vector<8x1xf32>,
    return
  }
  func.func @transform_0(%arg0: i32) -> (i32, i32) {
    %c0_i32 = arith.constant 0 : i32
    %c0_i32_0 = arith.constant 0 : i32
    %c0_i32_1 = arith.constant 0 : i32
    return %c0_i32, %c0_i32_0 : i32, i32
  }
  func.func @transform_1(%arg0: i32) -> (i32, i32) {
    %c0_i32 = arith.constant 0 : i32
    %c0_i32_0 = arith.constant 0 : i32
    return %c0_i32, %arg0 : i32, i32
  }
  func.func @transform_2(%arg0: i32) -> (i32, i32) {
    %c0_i32 = arith.constant 0 : i32
    %c0_i32_0 = arith.constant 0 : i32
    return %c0_i32, %arg0 : i32, i32
  }
  func.func @transform_3(%arg0: i32) -> (i32, i32) {
    %c0_i32 = arith.constant 0 : i32
    %c0_i32_0 = arith.constant 0 : i32
    return %c0_i32, %arg0 : i32, i32
  }
  func.func @transform_4(%arg0: i32) -> (i32, i32) {
    %c0_i32 = arith.constant 0 : i32
    %c0_i32_0 = arith.constant 0 : i32
    return %c0_i32, %arg0 : i32, i32
  }
  func.func @transform_5(%arg0: i32) -> (i32, i32) {
    %c0_i32 = arith.constant 0 : i32
    %c0_i32_0 = arith.constant 0 : i32
    return %arg0, %c0_i32 : i32, i32
  }
}

module attributes {stable_mosaic.version = 11 : i64} {
  func.func @bn_act_pool_kernel(%arg0: i32, %arg1: memref<8x2xf32, #tpu.memory_space<vmem>>, %arg2: memref<8x128xf32, #tpu.memory_space<vmem>>, %arg3: memref<8x128xf32, #tpu.memory_space<vmem>>, %arg4: memref<8x128xf32, #tpu.memory_space<vmem>>) attributes {dimension_semantics = [#tpu.dimension_semantics<parallel>], iteration_bounds = array<i64: 2>, scalar_prefetch = 0 : i64, scratch_operands = 0 : i64, tpu.core_type = #tpu.core_type<tc>, window_params = [{pipeline_mode = #tpu.pipeline_mode<synchronous>, transform_indices = @transform_0, window_bounds = array<i64: 8, 2>}, {transform_indices = @transform_1, window_bounds = array<i64: 8, 128>}, {transform_indices = @transform_2, window_bounds = array<i64: 8, 128>}, {transform_indices = @transform_3, window_bounds = array<i64: 8, 128>}]} {
    %c0 = arith.constant 0 : index
    %c0_0 = arith.constant 0 : index
    %0 = vector.load %arg1[%c0, %c0_0] : memref<8x2xf32, #tpu.memory_space<vmem>>, vector<8x1xf32>
    %c0_1 = arith.constant 0 : index
    %c1 = arith.constant 1 : index
    %1 = vector.load %arg1[%c0_1, %c1] : memref<8x2xf32, #tpu.memory_space<vmem>>, vector<8x1xf32>
    %c0_2 = arith.constant 0 : index
    %c0_3 = arith.constant 0 : index
    %2 = vector.load %arg2[%c0_2, %c0_3] : memref<8x128xf32, #tpu.memory_space<vmem>>, vector<8x128xf32>
    %3 = vector.broadcast %0 : vector<8x1xf32> to vector<8x128xf32>
    %4 = arith.mulf %2, %3 : vector<8x128xf32>
    %5 = vector.broadcast %1 : vector<8x1xf32> to vector<8x128xf32>
    %6 = arith.addf %4, %5 : vector<8x128xf32>
    %c0_4 = arith.constant 0 : index
    %c0_5 = arith.constant 0 : index
    %7 = vector.load %arg3[%c0_4, %c0_5] : memref<8x128xf32, #tpu.memory_space<vmem>>, vector<8x128xf32>
    %8 = vector.broadcast %0 : vector<8x1xf32> to vector<8x128xf32>
    %9 = arith.mulf %7, %8 : vector<8x128xf32>
    %10 = vector.broadcast %1 : vector<8x1xf32> to vector<8x128xf32>
    %11 = arith.addf %9, %10 : vector<8x128xf32>
    %cst = arith.constant 0.000000e+00 : f32
    %12 = vector.broadcast %cst : f32 to vector<8x128xf32>
    %13 = arith.cmpf ogt, %6, %12 : vector<8x128xf32>
    %cst_6 = arith.constant 0.00999999977 : f32
    %14 = vector.broadcast %cst_6 : f32 to vector<8x128xf32>
    %15 = arith.mulf %14, %6 : vector<8x128xf32>
    %16 = arith.select %13, %6, %15 : vector<8x128xi1>, vector<8x128xf32>
    %cst_7 = arith.constant 0.000000e+00 : f32
    %17 = vector.broadcast %cst_7 : f32 to vector<8x128xf32>
    %18 = arith.cmpf ogt, %11, %17 : vector<8x128xf32>
    %cst_8 = arith.constant 0.00999999977 : f32
    %19 = vector.broadcast %cst_8 : f32 to vector<8x128xf32>
    %20 = arith.mulf %19, %11 : vector<8x128xf32>
    %21 = arith.select %18, %11, %20 : vector<8x128xi1>, vector<8x128xf32>
    %22 = arith.addf %16, %21 : vector<8x128xf32>
    %cst_9 = arith.constant 5.000000e-01 : f32
    %23 = vector.broadcast %cst_9 : f32 to vector<8x128xf32>
    %24 = arith.mulf %23, %22 : vector<8x128xf32>
    %c0_10 = arith.constant 0 : index
    %c0_11 = arith.constant 0 : index
    %25 = vector.load %arg4[%c0_10, %c0_11] : memref<8x128xf32, #tpu.memory_space<vmem>>, vector<8x128xf32>
    tpu.vector_store %arg4[%c0_10, %c0_11], %24 {strides = array<i32>} : memref<8x128xf32, #tpu.memory_space<vmem>>, vector<8x128xf32>,
    return
  }
  func.func @transform_0(%arg0: i32) -> (i32, i32) {
    %c0_i32 = arith.constant 0 : i32
    %c0_i32_0 = arith.constant 0 : i32
    %c0_i32_1 = arith.constant 0 : i32
    return %c0_i32, %c0_i32_0 : i32, i32
  }
  func.func @transform_1(%arg0: i32) -> (i32, i32) {
    %c0_i32 = arith.constant 0 : i32
    %c0_i32_0 = arith.constant 0 : i32
    return %c0_i32, %arg0 : i32, i32
  }
  func.func @transform_2(%arg0: i32) -> (i32, i32) {
    %c0_i32 = arith.constant 0 : i32
    %c0_i32_0 = arith.constant 0 : i32
    return %c0_i32, %arg0 : i32, i32
  }
  func.func @transform_3(%arg0: i32) -> (i32, i32) {
    %c0_i32 = arith.constant 0 : i32
    %c0_i32_0 = arith.constant 0 : i32
    return %c0_i32, %arg0 : i32, i32
  }
}

</mosaic_0001>

<llo_original>
// kernel: conv_block_forward.2
$region0: #{conv_block_forward.2}
  #allocation0 [shape = 'u32[]', space=smem, size = 0x4, offset = 0x4, fixed_abs, tag = 'smem constant byte address 0x4 - core index']
  #allocation1 [shape = 'u32[144,128]{1,0:T(1,128)}', space=vmem, size = 0x12000, scoped, tag = 'internal scratch']
  %s0 = inlined_call_operand.hbm [shape: bf16[8,36], index: 0, kind: input, shape index: {}]
  %s1 = inlined_call_operand.hbm [shape: bf16[36,256], index: 1, kind: input, shape index: {}]
  %s2 = inlined_call_operand.hbm [shape: bf16[36,256], index: 2, kind: input, shape index: {}]
  %s3 = inlined_call_operand.hbm [shape: f32[8,256], index: 3, kind: output, shape index: {0}]
  %s4 = inlined_call_operand.hbm [shape: f32[8,256], index: 4, kind: output, shape index: {1}]
  %s5 = inlined_call_operand.hbm [shape: f32[16,2], index: 5, kind: output, shape index: {2}]
  %6 = xla_tuple %s3, %s4, %s5
  %s7 = sld [smem:[#allocation0]]
  $region73: #{conv_block_forward.2} parent=0
    _
  %s9 = ssub.s32 1, %s7
  %s10 = scalar_select 0, %s9, %s7
  $region1: #{conv_block_forward.2} parent=0
    #allocation2 [shape = 'u8[2048]{0}', space=vmem, size = 0x800, scoped, tag = 'input window, operand 0, single buffered']
    #allocation3 [shape = 's32[2]{0}', space=sflag, size = 0x8, scoped, tag = 'scoped memory for conv_block_forward.2']
    #allocation4 [shape = 's32[2]{0}', space=sflag, size = 0x8, scoped, tag = 'scoped memory for conv_block_forward.2']
    #allocation5 [shape = 'u8[20480]{0}', space=vmem, size = 0x5000, scoped, tag = 'input window, operand 1']
    #allocation6 [shape = 's32[2]{0}', space=sflag, size = 0x8, scoped, tag = 'scoped memory for conv_block_forward.2']
    #allocation7 [shape = 'u8[20480]{0}', space=vmem, size = 0x5000, scoped, tag = 'input window, operand 2']
    #allocation8 [shape = 'u8[8192]{0}', space=vmem, size = 0x2000, scoped, tag = 'output window, operand 0']
    #allocation9 [shape = 'u8[8192]{0}', space=vmem, size = 0x2000, scoped, tag = 'output window, operand 1']
    #allocation10 [shape = 's32[2]{0}', space=sflag, size = 0x8, scoped, tag = 'scoped memory for conv_block_forward.2']
    #allocation11 [shape = 'u8[8192]{0}', space=vmem, size = 0x2000, scoped, tag = 'output window, operand 2']
    %11 = vsyncpa [#allocation3], 0
    %12 = vsyncpa [#allocation6], 0
    %s13 = scalar_lea.sflag [#allocation6], 1
    %14 = vsyncpa %s13, 0
    %15 = vsyncpa [#allocation4], 0
    %s16 = scalar_lea.sflag [#allocation4], 1
    %17 = vsyncpa %s16, 0
    %18 = vsyncpa [#allocation10], 0
    %s19 = scalar_lea.sflag [#allocation10], 1
    %20 = vsyncpa %s19, 0
    loop: start=0, step=1, limit=4
    $region2: #{conv_block_forward.2} parent=1 // loop_pre_header
      _
    $region3: #{conv_block_forward.2} parent=1 // loop_header
      %s22 = sphi 0, %s26
      %p23 = scmp.ge.s32.totalorder %s22, 4
      %s30 = sphi 0, %s30
      %s32 = sphi 0, %s30
      %s33 = sphi 0, %s32
      %s47 = sphi 0, %s33
      %s53 = sphi 0, %s55
      %s56 = sphi 0, %s53
      %s57 = sphi 0, %s56
      %s73 = sphi 0, %s57
      %s79 = sphi 0, %s81
      %s82 = sphi 0, %s79
      %s83 = sphi 0, %s82
      %s99 = sphi 0, %s83
      %s105 = sphi 0, %s107
      %s108 = sphi 0, %s105
      %s109 = sphi 0, %s108
      %s125 = sphi 0, %s109
      %s131 = sphi 0, %s133
      %s134 = sphi 0, %s131
      %s135 = sphi 0, %s134
      %s151 = sphi 0, %s135
      %s157 = sphi 0, %s159
      %s160 = sphi 0, %s157
      %s161 = sphi 0, %s160
      %s177 = sphi 0, %s161
    $region4: #{conv_block_forward.2} parent=1 // loop_header_branch
      %25 = sbr.rel (%p23) target = $region8
    $region5: #{conv_block_forward.2} parent=1 // loop_body
      %s27 = ssub.s32 %s22, 1
      %s28 = ssub.s32 %s22, 2
      %s29 = sadd.s32 %s22, 1
      %s31 = sadd.s32 %s30, 1
      %p34 = scmp.eq.s32.totalorder %s22, 1
      %p35 = scmp.ne.s32.totalorder %s30, %s32
      %p36 = scmp.eq.s32.totalorder %s22, 0
      %p37 = por %p35, %p36
      %p38 = scmp.ne.s32.totalorder %s30, %s32
      %p39 = scmp.eq.s32.totalorder %s27, 1
      %p40 = por %p38, %p39
      %p41 = scmp.ne.s32.totalorder %s32, %s33
      %p42 = scmp.eq.s32.totalorder %s27, 0
      %p43 = por %p41, %p42
      %p44 = scmp.ne.s32.totalorder %s32, %s33
      %p45 = scmp.eq.s32.totalorder %s28, 1
      %p46 = por %p44, %p45
      %p48 = scmp.ne.s32.totalorder %s33, %s47
      %p49 = scmp.eq.s32.totalorder %s28, 0
      %p50 = por %p48, %p49
      %s51 = ssub.s32 %s22, %s29
      %p52 = scmp.eq.s32.totalorder %s51, 0
      %s54 = sadd.s32 %s53, 1
      %s55 = scalar_select %p52, %s53, %s54
      %p58 = pneg %p52
      %p59 = scmp.eq.s32.totalorder %s22, 1
      %p60 = por %p58, %p59
      %p61 = scmp.ne.s32.totalorder %s53, %s56
      %p62 = scmp.eq.s32.totalorder %s22, 0
      %p63 = por %p61, %p62
      %p64 = scmp.ne.s32.totalorder %s53, %s56
      %p65 = scmp.eq.s32.totalorder %s27, 1
      %p66 = por %p64, %p65
      %p67 = scmp.ne.s32.totalorder %s56, %s57
      %p68 = scmp.eq.s32.totalorder %s27, 0
      %p69 = por %p67, %p68
      %p70 = scmp.ne.s32.totalorder %s56, %s57
      %p71 = scmp.eq.s32.totalorder %s28, 1
      %p72 = por %p70, %p71
      %p74 = scmp.ne.s32.totalorder %s57, %s73
      %p75 = scmp.eq.s32.totalorder %s28, 0
      %p76 = por %p74, %p75
      %s77 = ssub.s32 %s22, %s29
      %p78 = scmp.eq.s32.totalorder %s77, 0
      %s80 = sadd.s32 %s79, 1
      %s81 = scalar_select %p78, %s79, %s80
      %p84 = pneg %p78
      %p85 = scmp.eq.s32.totalorder %s22, 1
      %p86 = por %p84, %p85
      %p87 = scmp.ne.s32.totalorder %s79, %s82
      %p88 = scmp.eq.s32.totalorder %s22, 0
      %p89 = por %p87, %p88
      %p90 = scmp.ne.s32.totalorder %s79, %s82
      %p91 = scmp.eq.s32.totalorder %s27, 1
      %p92 = por %p90, %p91
      %p93 = scmp.ne.s32.totalorder %s82, %s83
      %p94 = scmp.eq.s32.totalorder %s27, 0
      %p95 = por %p93, %p94
      %p96 = scmp.ne.s32.totalorder %s82, %s83
      %p97 = scmp.eq.s32.totalorder %s28, 1
      %p98 = por %p96, %p97
      %p100 = scmp.ne.s32.totalorder %s83, %s99
      %p101 = scmp.eq.s32.totalorder %s28, 0
      %p102 = por %p100, %p101
      %s103 = ssub.s32 %s22, %s29
      %p104 = scmp.eq.s32.totalorder %s103, 0
      %s106 = sadd.s32 %s105, 1
      %s107 = scalar_select %p104, %s105, %s106
      %p110 = pneg %p104
      %p111 = scmp.eq.s32.totalorder %s22, 1
      %p112 = por %p110, %p111
      %p113 = scmp.ne.s32.totalorder %s105, %s108
      %p114 = scmp.eq.s32.totalorder %s22, 0
      %p115 = por %p113, %p114
      %p116 = scmp.ne.s32.totalorder %s105, %s108
      %p117 = scmp.eq.s32.totalorder %s27, 1
      %p118 = por %p116, %p117
      %p119 = scmp.ne.s32.totalorder %s108, %s109
      %p120 = scmp.eq.s32.totalorder %s27, 0
      %p121 = por %p119, %p120
      %p122 = scmp.ne.s32.totalorder %s108, %s109
      %p123 = scmp.eq.s32.totalorder %s28, 1
      %p124 = por %p122, %p123
      %p126 = scmp.ne.s32.totalorder %s109, %s125
      %p127 = scmp.eq.s32.totalorder %s28, 0
      %p128 = por %p126, %p127
      %s129 = ssub.s32 %s22, %s29
      %p130 = scmp.eq.s32.totalorder %s129, 0
      %s132 = sadd.s32 %s131, 1
      %s133 = scalar_select %p130, %s131, %s132
      %p136 = pneg %p130
      %p137 = scmp.eq.s32.totalorder %s22, 1
      %p138 = por %p136, %p137
      %p139 = scmp.ne.s32.totalorder %s131, %s134
      %p140 = scmp.eq.s32.totalorder %s22, 0
      %p141 = por %p139, %p140
      %p142 = scmp.ne.s32.totalorder %s131, %s134
      %p143 = scmp.eq.s32.totalorder %s27, 1
      %p144 = por %p142, %p143
      %p145 = scmp.ne.s32.totalorder %s134, %s135
      %p146 = scmp.eq.s32.totalorder %s27, 0
      %p147 = por %p145, %p146
      %p148 = scmp.ne.s32.totalorder %s134, %s135
      %p149 = scmp.eq.s32.totalorder %s28, 1
      %p150 = por %p148, %p149
      %p152 = scmp.ne.s32.totalorder %s135, %s151
      %p153 = scmp.eq.s32.totalorder %s28, 0
      %p154 = por %p152, %p153
      %s155 = ssub.s32 %s22, %s29
      %p156 = scmp.eq.s32.totalorder %s155, 0
      %s158 = sadd.s32 %s157, 1
      %s159 = scalar_select %p156, %s157, %s158
      %p162 = pneg %p156
      %p163 = scmp.eq.s32.totalorder %s22, 1
      %p164 = por %p162, %p163
      %p165 = scmp.ne.s32.totalorder %s157, %s160
      %p166 = scmp.eq.s32.totalorder %s22, 0
      %p167 = por %p165, %p166
      %p168 = scmp.ne.s32.totalorder %s157, %s160
      %p169 = scmp.eq.s32.totalorder %s27, 1
      %p170 = por %p168, %p169
      %p171 = scmp.ne.s32.totalorder %s160, %s161
      %p172 = scmp.eq.s32.totalorder %s27, 0
      %p173 = por %p171, %p172
      %p174 = scmp.ne.s32.totalorder %s160, %s161
      %p175 = scmp.eq.s32.totalorder %s28, 1
      %p176 = por %p174, %p175
      %p178 = scmp.ne.s32.totalorder %s161, %s177
      %p179 = scmp.eq.s32.totalorder %s28, 0
      %p180 = por %p178, %p179
      %p181 = scmp.le.s32.totalorder 1, %s22
      %p182 = scmp.lt.s32.totalorder %s22, 3
      %p183 = pnand %p181, %p182
      %p184 = pneg %p183
      // Predicated region
      $region9: #{conv_block_forward.2} parent=5 // pred_check
        _
      $region10: #{conv_block_forward.2} parent=5 // pred_check_branch
        %186 = sbr.rel (%p183) target = $region12
      $region11: #{conv_block_forward.2} parent=5 // pred_region
        %s187 = ssub.s32 %s22, 1
        // Predicated region
        $region13: #{conv_block_forward.2} parent=11 // pred_check
          %p188 = pneg %p43
        $region14: #{conv_block_forward.2} parent=11 // pred_check_branch
          %190 = sbr.rel (%p188) target = $region16
        $region15: #{conv_block_forward.2} parent=11 // pred_region
          %s192 = ssub.s32 64, 64
          %193 = vsyncadd [#allocation3], %s192
          %s195 = sshll.u32 [#allocation2], 4
          %s196 = int_to_ptr.vmem [resolvable:$true] %s195
          %198 = dma.hbm_to_vmem [thread:$0]  %s0, 64, %s196, [#allocation3]
        $region16: #{conv_block_forward.2} parent=11 // pred_fallthru
          _
      $region12: #{conv_block_forward.2} parent=5 // pred_fallthru
        _
      %p199 = scmp.lt.s32.totalorder %s22, 2
      // Predicated region
      $region17: #{conv_block_forward.2} parent=5 // pred_check
        %p200 = pneg %p199
      $region18: #{conv_block_forward.2} parent=5 // pred_check_branch
        %202 = sbr.rel (%p200) target = $region20
      $region19: #{conv_block_forward.2} parent=5 // pred_region
        // Predicated region
        $region21: #{conv_block_forward.2} parent=19 // pred_check
          %p203 = pneg %p63
        $region22: #{conv_block_forward.2} parent=19 // pred_check_branch
          %205 = sbr.rel (%p203) target = $region24
        $region23: #{conv_block_forward.2} parent=19 // pred_region
          %s206 = sand.u32 %s22, 1
          %s207 = scalar_lea.sflag [#allocation6], %s206
          %s208 = sand.u32 %s53, 1
          %s209 = smul.addr %s208, 20
          %s210 = scalar_lea.vmem [#allocation5], %s209
          %s212 = ssub.s32 320, 320
          %213 = vsyncadd %s207, %s212
          %s214 = smul.addr %s22, 64
          %s215 = scalar_lea.hbm %s1, %s214
          %s216 = sshll.u32 %s210, 4
          %s217 = int_to_ptr.vmem [resolvable:$true] %s216
          %222 = dma.hbm_to_vmem [thread:$0]  %s215, 320, %s217, %s207, 128, 64, 4
        $region24: #{conv_block_forward.2} parent=19 // pred_fallthru
          _
        // Predicated region
        $region25: #{conv_block_forward.2} parent=19 // pred_check
          %p223 = pneg %p89
        $region26: #{conv_block_forward.2} parent=19 // pred_check_branch
          %225 = sbr.rel (%p223) target = $region28
        $region27: #{conv_block_forward.2} parent=19 // pred_region
          %s226 = sand.u32 %s22, 1
          %s227 = scalar_lea.sflag [#allocation6], %s226
          %s228 = sand.u32 %s79, 1
          %s229 = smul.addr %s228, 20
          %s230 = scalar_lea.vmem [#allocation7], %s229
          %s232 = ssub.s32 320, 320
          %233 = vsyncadd %s227, %s232
          %s234 = smul.addr %s22, 64
          %s235 = scalar_lea.hbm %s2, %s234
          %s236 = sshll.u32 %s230, 4
          %s237 = int_to_ptr.vmem [resolvable:$true] %s236
          %242 = dma.hbm_to_vmem [thread:$0]  %s235, 320, %s237, %s227, 128, 64, 4
        $region28: #{conv_block_forward.2} parent=19 // pred_fallthru
          _
      $region20: #{conv_block_forward.2} parent=5 // pred_fallthru
        _
      %p243 = scmp.le.s32.totalorder 1, %s22
      %p244 = scmp.lt.s32.totalorder %s22, 3
      %p245 = pnand %p243, %p244
      %p246 = pneg %p245
      // Predicated region
      $region29: #{conv_block_forward.2} parent=5 // pred_check
        _
      $region30: #{conv_block_forward.2} parent=5 // pred_check_branch
        %248 = sbr.rel (%p245) target = $region32
      $region31: #{conv_block_forward.2} parent=5 // pred_region
        %s249 = ssub.s32 %s22, 1
        // Predicated region
        $region33: #{conv_block_forward.2} parent=31 // pred_check
          %p250 = pneg %p43
        $region34: #{conv_block_forward.2} parent=31 // pred_check_branch
          %252 = sbr.rel (%p250) target = $region36
        $region35: #{conv_block_forward.2} parent=31 // pred_region
          %253 = dma.done [#allocation3], 64
        $region36: #{conv_block_forward.2} parent=31 // pred_fallthru
          _
        %s254 = sand.u32 %s27, 1
        %s255 = scalar_lea.sflag [#allocation6], %s254
        %s256 = sand.u32 %s56, 1
        %s257 = smul.addr %s256, 20
        %s258 = scalar_lea.vmem [#allocation5], %s257
        // Predicated region
        $region37: #{conv_block_forward.2} parent=31 // pred_check
          %p259 = pneg %p69
        $region38: #{conv_block_forward.2} parent=31 // pred_check_branch
          %261 = sbr.rel (%p259) target = $region40
        $region39: #{conv_block_forward.2} parent=31 // pred_region
          %262 = dma.done %s255, 320
        $region40: #{conv_block_forward.2} parent=31 // pred_fallthru
          _
        %s263 = sand.u32 %s27, 1
        %s264 = scalar_lea.sflag [#allocation6], %s263
        %s265 = sand.u32 %s82, 1
        %s266 = smul.addr %s265, 20
        %s267 = scalar_lea.vmem [#allocation7], %s266
        // Predicated region
        $region41: #{conv_block_forward.2} parent=31 // pred_check
          %p268 = pneg %p95
        $region42: #{conv_block_forward.2} parent=31 // pred_check_branch
          %270 = sbr.rel (%p268) target = $region44
        $region43: #{conv_block_forward.2} parent=31 // pred_region
          %271 = dma.done %s264, 320
        $region44: #{conv_block_forward.2} parent=31 // pred_fallthru
          _
        %p272 = pneg %p43
        %p273 = pneg %p40
        %s274 = sand.u32 %s27, 1
        %s275 = scalar_lea.sflag [#allocation6], %s274
        %s276 = sand.u32 %s56, 1
        %s277 = smul.addr %s276, 20
        %s278 = scalar_lea.vmem [#allocation5], %s277
        %p279 = pneg %p69
        %p280 = pneg %p66
        %s281 = sand.u32 %s27, 1
        %s282 = scalar_lea.sflag [#allocation6], %s281
        %s283 = sand.u32 %s82, 1
        %s284 = smul.addr %s283, 20
        %s285 = scalar_lea.vmem [#allocation7], %s284
        %p286 = pneg %p95
        %p287 = pneg %p92
        %p288 = pneg %p121
        %p289 = pneg %p118
        %s290 = sand.u32 %s108, 1
        %s291 = scalar_lea.sflag [#allocation4], %s290
        %s292 = sand.u32 %s108, 1
        %s293 = smul.addr %s292, 8
        %s294 = scalar_lea.vmem [#allocation8], %s293
        %p295 = pneg %p147
        %p296 = pneg %p144
        %s297 = sand.u32 %s27, 1
        %s298 = scalar_lea.sflag [#allocation10], %s297
        %s299 = sand.u32 %s134, 1
        %s300 = smul.addr %s299, 8
        %s301 = scalar_lea.vmem [#allocation9], %s300
        %p302 = pneg %p173
        %p303 = pneg %p170
        %s304 = sand.u32 %s27, 1
        %s305 = scalar_lea.sflag [#allocation10], %s304
        %s306 = sand.u32 %s160, 1
        %s307 = smul.addr %s306, 8
        %s308 = scalar_lea.vmem [#allocation11], %s307
        %v310 = vld [vmem:[#allocation2] sm:$0xf]
        %v311 = vld [vmem:[%s258] sm:$0xf]
        %v312 = vld [vmem:[%s258 + $0x4] sm:$0xf]
        %v313 = vld [vmem:[%s258 + $0x8] sm:$0xf]
        %v314 = vld [vmem:[%s258 + $0xc] sm:$0xf]
        %v315 = vld [vmem:[%s258 + $0x10] sm:$0x3]
        %v321 = vunpack.c.l.b16 %v311
        %v322 = vunpack.c.l.b16 %v312
        %v323 = vunpack.c.l.b16 %v313
        %v324 = vunpack.c.l.b16 %v314
        %v325 = vunpack.c.l.b16 %v315
        %v326 = vpack.c.b16 %v322, %v321
        %v327 = vpack.c.b16 %v324, %v323
        %v328 = vpack.c.b16 %v325, %v325
        %vm331 = vcmask 293888
        %v333 = vsel %vm331, %v310, 0
        %vm335 = vcmask 1041408
        %v337 = vsel %vm335, %v328, 0
        %339 = vmatprep.subr.bf16.mxu0 0
        %340 = vmatpush1.bf16.msra.mxu0 %v326
        %341 = vmatprep.subr.bf16.mxu0 0
        %342 = vmatpush1.bf16.msra.mxu0 %v327
        %343 = vmatprep.subr.bf16.mxu0 0
        %344 = vmatpush1.bf16.msra.mxu0 %v337
        %345 = vmatprep.subr.bf16.mxu0 0
        %346 = vmatpush1.bf16.msra.mxu0 0
        %347 = vmatprep.subr.bf16.mxu0 0
        %348 = vmatpush1.bf16.msra.mxu0 0
        %349 = vmatprep.subr.bf16.mxu0 0
        %350 = vmatpush1.bf16.msra.mxu0 0
        %351 = vmatprep.subr.bf16.mxu0 0
        %352 = vmatpush1.bf16.msra.mxu0 0
        %353 = vmatprep.subr.bf16.mxu0 0
        %354 = vmatpush1.bf16.msra.mxu0 0
        %355 = vmatprep.subr.bf16.mxu0 0
        %356 = vmatpush1.bf16.msra.mxu0 0
        %357 = vmatprep.subr.bf16.mxu0 0
        %358 = vmatpush1.bf16.msra.mxu0 0
        %359 = vmatprep.subr.bf16.mxu0 0
        %360 = vmatpush1.bf16.msra.mxu0 0
        %361 = vmatprep.subr.bf16.mxu0 0
        %362 = vmatpush1.bf16.msra.mxu0 0
        %363 = vmatprep.subr.bf16.mxu0 0
        %364 = vmatpush1.bf16.msra.mxu0 0
        %365 = vmatprep.subr.bf16.mxu0 0
        %366 = vmatpush1.bf16.msra.mxu0 0
        %367 = vmatprep.subr.bf16.mxu0 0
        %368 = vmatpush1.bf16.msra.mxu0 0
        %369 = vmatprep.subr.bf16.mxu0 0
        %370 = vmatpush1.bf16.msra.mxu0 0
        %371 = vmatprep.mubr.bf16.mxu0 0
        %372 = vmatmul.mubr.bf16.gmra.mrb[0].mxu0 %v333
        %v373 = vpop.f32.mrb[0].mxu0
        %v374 = vadd.f32 0.0, %v373
        %v375 = vpop.f32.mrb[0].mxu0
        %v376 = vpop.f32.mrb[0].mxu0
        %v377 = vpop.f32.mrb[0].mxu0
        %378 = vdwg.mxu0
        %v379 = vld [vmem:[%s267] sm:$0xf]
        %v380 = vld [vmem:[%s267 + $0x4] sm:$0xf]
        %v381 = vld [vmem:[%s267 + $0x8] sm:$0xf]
        %v382 = vld [vmem:[%s267 + $0xc] sm:$0xf]
        %v383 = vld [vmem:[%s267 + $0x10] sm:$0x3]
        %v389 = vunpack.c.l.b16 %v379
        %v390 = vunpack.c.l.b16 %v380
        %v391 = vunpack.c.l.b16 %v381
        %v392 = vunpack.c.l.b16 %v382
        %v393 = vunpack.c.l.b16 %v383
        %v394 = vpack.c.b16 %v390, %v389
        %v395 = vpack.c.b16 %v392, %v391
        %v396 = vpack.c.b16 %v393, %v393
        %v400 = vsel %vm335, %v396, 0
        %402 = vmatprep.subr.bf16.mxu0 0
        %403 = vmatpush1.bf16.msra.mxu0 %v394
        %404 = vmatprep.subr.bf16.mxu0 0
        %405 = vmatpush1.bf16.msra.mxu0 %v395
        %406 = vmatprep.subr.bf16.mxu0 0
        %407 = vmatpush1.bf16.msra.mxu0 %v400
        %408 = vmatprep.subr.bf16.mxu0 0
        %409 = vmatpush1.bf16.msra.mxu0 0
        %410 = vmatprep.subr.bf16.mxu0 0
        %411 = vmatpush1.bf16.msra.mxu0 0
        %412 = vmatprep.subr.bf16.mxu0 0
        %413 = vmatpush1.bf16.msra.mxu0 0
        %414 = vmatprep.subr.bf16.mxu0 0
        %415 = vmatpush1.bf16.msra.mxu0 0
        %416 = vmatprep.subr.bf16.mxu0 0
        %417 = vmatpush1.bf16.msra.mxu0 0
        %418 = vmatprep.subr.bf16.mxu0 0
        %419 = vmatpush1.bf16.msra.mxu0 0
        %420 = vmatprep.subr.bf16.mxu0 0
        %421 = vmatpush1.bf16.msra.mxu0 0
        %422 = vmatprep.subr.bf16.mxu0 0
        %423 = vmatpush1.bf16.msra.mxu0 0
        %424 = vmatprep.subr.bf16.mxu0 0
        %425 = vmatpush1.bf16.msra.mxu0 0
        %426 = vmatprep.subr.bf16.mxu0 0
        %427 = vmatpush1.bf16.msra.mxu0 0
        %428 = vmatprep.subr.bf16.mxu0 0
        %429 = vmatpush1.bf16.msra.mxu0 0
        %430 = vmatprep.subr.bf16.mxu0 0
        %431 = vmatpush1.bf16.msra.mxu0 0
        %432 = vmatprep.subr.bf16.mxu0 0
        %433 = vmatpush1.bf16.msra.mxu0 0
        %434 = vmatprep.mubr.bf16.mxu0 0
        %435 = vmatmul.mubr.bf16.gmra.mrb[0].mxu0 %v333
        %v436 = vpop.f32.mrb[0].mxu0
        %v437 = vadd.f32 0.0, %v436
        %v438 = vpop.f32.mrb[0].mxu0
        %v439 = vpop.f32.mrb[0].mxu0
        %v440 = vpop.f32.mrb[0].mxu0
        %441 = vdwg.mxu0
        %442 = vst [vmem:[%s294] sm:$0xff] %v374
        %443 = vst [vmem:[%s301] sm:$0xff] %v437
        %444 = vadd.xlane.f32.xlu0 %v374
        %v445 = vpop.xlane.xlu0 %444
        %446 = vadd.xlane.f32.xlu0 %v437
        %v447 = vpop.xlane.xlu0 %446
        %v448 = vadd.f32 %v445, %v447
        %v449 = vmul.f32 %v374, %v374
        %450 = vadd.xlane.f32.xlu0 %v449
        %v451 = vpop.xlane.xlu0 %450
        %v452 = vmul.f32 %v437, %v437
        %453 = vadd.xlane.f32.xlu0 %v452
        %v454 = vpop.xlane.xlu0 %453
        %v455 = vadd.f32 %v451, %v454
        %vm456 = vcmask 7168
        %457 = vst.msk [vmem:[%s308] sm:$0xff] %vm456, %v448
        %vm458 = vcmask 15368
        %459 = vst.msk [vmem:[%s308] sm:$0xff] %vm458, %v455
        %s460 = sand.u32 %s108, 1
        %s461 = scalar_lea.sflag [#allocation4], %s460
        %s462 = sand.u32 %s108, 1
        %s463 = smul.addr %s462, 8
        %s464 = scalar_lea.vmem [#allocation8], %s463
        %s465 = sand.u32 %s27, 1
        %s466 = scalar_lea.sflag [#allocation10], %s465
        %s467 = sand.u32 %s134, 1
        %s468 = smul.addr %s467, 8
        %s469 = scalar_lea.vmem [#allocation9], %s468
        %s470 = sand.u32 %s27, 1
        %s471 = scalar_lea.sflag [#allocation10], %s470
        %s472 = sand.u32 %s160, 1
        %s473 = smul.addr %s472, 8
        %s474 = scalar_lea.vmem [#allocation11], %s473
        // Predicated region
        $region45: #{conv_block_forward.2} parent=31 // pred_check
          %p475 = pneg %p118
        $region46: #{conv_block_forward.2} parent=31 // pred_check_branch
          %477 = sbr.rel (%p475) target = $region48
        $region47: #{conv_block_forward.2} parent=31 // pred_region
          %s479 = ssub.s32 128, 128
          %480 = vsyncadd %s461, %s479
          %s481 = smul.addr %s27, 128
          %s482 = scalar_lea.hbm %s3, %s481
          %s484 = sshll.u32 %s464, 4
          %s485 = int_to_ptr.vmem [resolvable:$true] %s484
          %487 = dma.vmem_to_hbm [thread:$0]  %s485, 128, %s482, %s461
        $region48: #{conv_block_forward.2} parent=31 // pred_fallthru
          _
        // Predicated region
        $region49: #{conv_block_forward.2} parent=31 // pred_check
          %p488 = pneg %p144
        $region50: #{conv_block_forward.2} parent=31 // pred_check_branch
          %490 = sbr.rel (%p488) target = $region52
        $region51: #{conv_block_forward.2} parent=31 // pred_region
          %s492 = ssub.s32 128, 128
          %493 = vsyncadd %s466, %s492
          %s494 = smul.addr %s27, 128
          %s495 = scalar_lea.hbm %s4, %s494
          %s497 = sshll.u32 %s469, 4
          %s498 = int_to_ptr.vmem [resolvable:$true] %s497
          %500 = dma.vmem_to_hbm [thread:$0]  %s498, 128, %s495, %s466
        $region52: #{conv_block_forward.2} parent=31 // pred_fallthru
          _
        // Predicated region
        $region53: #{conv_block_forward.2} parent=31 // pred_check
          %p501 = pneg %p170
        $region54: #{conv_block_forward.2} parent=31 // pred_check_branch
          %503 = sbr.rel (%p501) target = $region56
        $region55: #{conv_block_forward.2} parent=31 // pred_region
          %s505 = ssub.s32 128, 128
          %506 = vsyncadd %s471, %s505
          %s507 = smul.addr %s27, 128
          %s508 = scalar_lea.hbm %s5, %s507
          %s510 = sshll.u32 %s474, 4
          %s511 = int_to_ptr.vmem [resolvable:$true] %s510
          %513 = dma.vmem_to_hbm [thread:$0]  %s511, 128, %s508, %s471
        $region56: #{conv_block_forward.2} parent=31 // pred_fallthru
          _
      $region32: #{conv_block_forward.2} parent=5 // pred_fallthru
        _
      %p514 = scmp.le.s32.totalorder 2, %s22
      // Predicated region
      $region57: #{conv_block_forward.2} parent=5 // pred_check
        %p515 = pneg %p514
      $region58: #{conv_block_forward.2} parent=5 // pred_check_branch
        %517 = sbr.rel (%p515) target = $region60
      $region59: #{conv_block_forward.2} parent=5 // pred_region
        %s518 = ssub.s32 %s22, 2
        // Predicated region
        $region61: #{conv_block_forward.2} parent=59 // pred_check
          %p519 = pneg %p124
        $region62: #{conv_block_forward.2} parent=59 // pred_check_branch
          %521 = sbr.rel (%p519) target = $region64
        $region63: #{conv_block_forward.2} parent=59 // pred_region
          %s522 = sand.u32 %s109, 1
          %s523 = scalar_lea.sflag [#allocation4], %s522
          %s524 = sand.u32 %s109, 1
          %s525 = smul.addr %s524, 8
          %s526 = scalar_lea.vmem [#allocation8], %s525
          %527 = dma.done %s523, 128
        $region64: #{conv_block_forward.2} parent=59 // pred_fallthru
          _
        // Predicated region
        $region65: #{conv_block_forward.2} parent=59 // pred_check
          %p528 = pneg %p150
        $region66: #{conv_block_forward.2} parent=59 // pred_check_branch
          %530 = sbr.rel (%p528) target = $region68
        $region67: #{conv_block_forward.2} parent=59 // pred_region
          %s531 = sand.u32 %s28, 1
          %s532 = scalar_lea.sflag [#allocation10], %s531
          %s533 = sand.u32 %s135, 1
          %s534 = smul.addr %s533, 8
          %s535 = scalar_lea.vmem [#allocation9], %s534
          %536 = dma.done %s532, 128
        $region68: #{conv_block_forward.2} parent=59 // pred_fallthru
          _
        // Predicated region
        $region69: #{conv_block_forward.2} parent=59 // pred_check
          %p537 = pneg %p176
        $region70: #{conv_block_forward.2} parent=59 // pred_check_branch
          %539 = sbr.rel (%p537) target = $region72
        $region71: #{conv_block_forward.2} parent=59 // pred_region
          %s540 = sand.u32 %s28, 1
          %s541 = scalar_lea.sflag [#allocation10], %s540
          %s542 = sand.u32 %s161, 1
          %s543 = smul.addr %s542, 8
          %s544 = scalar_lea.vmem [#allocation11], %s543
          %545 = dma.done %s541, 128
        $region72: #{conv_block_forward.2} parent=59 // pred_fallthru
          _
      $region60: #{conv_block_forward.2} parent=5 // pred_fallthru
        _
    $region6: #{conv_block_forward.2} parent=1 // loop_footer
      %s26 = sadd.s32 1, %s22
    $region7: #{conv_block_forward.2} parent=1 // loop_footer_branch
      %21 = sbr.rel target = $region3
    $region8: #{conv_block_forward.2} parent=1 // loop_exit
      _
    %546 = vsyncpa [#allocation3], 1
    %s547 = scalar_lea.sflag [#allocation3], 1
    %548 = vsyncpa %s547, 1
    %549 = vsyncpa [#allocation6], 1
    %s550 = scalar_lea.sflag [#allocation6], 1
    %551 = vsyncpa %s550, 1
    %552 = vsyncpa [#allocation4], 1
    %s553 = scalar_lea.sflag [#allocation4], 1
    %554 = vsyncpa %s553, 1
    %555 = vsyncpa [#allocation10], 1
    %s556 = scalar_lea.sflag [#allocation10], 1
    %557 = vsyncpa %s556, 1

// kernel: conv_block_forward.3
$region0: #{conv_block_forward.3}
  #allocation0 [shape = 'u32[]', space=smem, size = 0x4, offset = 0x4, fixed_abs, tag = 'smem constant byte address 0x4 - core index']
  #allocation1 [shape = 'u32[144,128]{1,0:T(1,128)}', space=vmem, size = 0x12000, scoped, tag = 'internal scratch']
  %s0 = inlined_call_operand.hbm [shape: f32[8,2], index: 0, kind: input, shape index: {}]
  %s1 = inlined_call_operand.hbm [shape: f32[8,256], index: 1, kind: input, shape index: {}]
  %s2 = inlined_call_operand.hbm [shape: f32[8,256], index: 2, kind: input, shape index: {}]
  %s3 = inlined_call_operand.hbm [shape: f32[8,256], index: 3, kind: output, shape index: {}]
  %s4 = sld [smem:[#allocation0]]
  $region57: #{conv_block_forward.3} parent=0
    _
  %s6 = ssub.s32 1, %s4
  %s7 = scalar_select 0, %s6, %s4
  $region1: #{conv_block_forward.3} parent=0
    #allocation2 [shape = 'u8[4096]{0}', space=vmem, size = 0x1000, scoped, tag = 'input window, operand 0, single buffered']
    #allocation3 [shape = 's32[2]{0}', space=sflag, size = 0x8, scoped, tag = 'scoped memory for conv_block_forward.3']
    #allocation4 [shape = 's32[2]{0}', space=sflag, size = 0x8, scoped, tag = 'scoped memory for conv_block_forward.3']
    #allocation5 [shape = 'u8[8192]{0}', space=vmem, size = 0x2000, scoped, tag = 'input window, operand 1']
    #allocation6 [shape = 's32[2]{0}', space=sflag, size = 0x8, scoped, tag = 'scoped memory for conv_block_forward.3']
    #allocation7 [shape = 'u8[8192]{0}', space=vmem, size = 0x2000, scoped, tag = 'input window, operand 2']
    #allocation8 [shape = 'u8[8192]{0}', space=vmem, size = 0x2000, scoped, tag = 'output window, operand 0']
    %8 = vsyncpa [#allocation3], 0
    %9 = vsyncpa [#allocation6], 0
    %s10 = scalar_lea.sflag [#allocation6], 1
    %11 = vsyncpa %s10, 0
    %12 = vsyncpa [#allocation4], 0
    %s13 = scalar_lea.sflag [#allocation4], 1
    %14 = vsyncpa %s13, 0
    loop: start=0, step=1, limit=4
    $region2: #{conv_block_forward.3} parent=1 // loop_pre_header
      _
    $region3: #{conv_block_forward.3} parent=1 // loop_header
      %s16 = sphi 0, %s20
      %p17 = scmp.ge.s32.totalorder %s16, 4
      %s24 = sphi 0, %s24
      %s26 = sphi 0, %s24
      %s27 = sphi 0, %s26
      %s41 = sphi 0, %s27
      %s47 = sphi 0, %s49
      %s50 = sphi 0, %s47
      %s51 = sphi 0, %s50
      %s67 = sphi 0, %s51
      %s73 = sphi 0, %s75
      %s76 = sphi 0, %s73
      %s77 = sphi 0, %s76
      %s93 = sphi 0, %s77
      %s99 = sphi 0, %s101
      %s102 = sphi 0, %s99
      %s103 = sphi 0, %s102
      %s119 = sphi 0, %s103
    $region4: #{conv_block_forward.3} parent=1 // loop_header_branch
      %19 = sbr.rel (%p17) target = $region8
    $region5: #{conv_block_forward.3} parent=1 // loop_body
      %s21 = ssub.s32 %s16, 1
      %s22 = ssub.s32 %s16, 2
      %s23 = sadd.s32 %s16, 1
      %s25 = sadd.s32 %s24, 1
      %p28 = scmp.eq.s32.totalorder %s16, 1
      %p29 = scmp.ne.s32.totalorder %s24, %s26
      %p30 = scmp.eq.s32.totalorder %s16, 0
      %p31 = por %p29, %p30
      %p32 = scmp.ne.s32.totalorder %s24, %s26
      %p33 = scmp.eq.s32.totalorder %s21, 1
      %p34 = por %p32, %p33
      %p35 = scmp.ne.s32.totalorder %s26, %s27
      %p36 = scmp.eq.s32.totalorder %s21, 0
      %p37 = por %p35, %p36
      %p38 = scmp.ne.s32.totalorder %s26, %s27
      %p39 = scmp.eq.s32.totalorder %s22, 1
      %p40 = por %p38, %p39
      %p42 = scmp.ne.s32.totalorder %s27, %s41
      %p43 = scmp.eq.s32.totalorder %s22, 0
      %p44 = por %p42, %p43
      %s45 = ssub.s32 %s16, %s23
      %p46 = scmp.eq.s32.totalorder %s45, 0
      %s48 = sadd.s32 %s47, 1
      %s49 = scalar_select %p46, %s47, %s48
      %p52 = pneg %p46
      %p53 = scmp.eq.s32.totalorder %s16, 1
      %p54 = por %p52, %p53
      %p55 = scmp.ne.s32.totalorder %s47, %s50
      %p56 = scmp.eq.s32.totalorder %s16, 0
      %p57 = por %p55, %p56
      %p58 = scmp.ne.s32.totalorder %s47, %s50
      %p59 = scmp.eq.s32.totalorder %s21, 1
      %p60 = por %p58, %p59
      %p61 = scmp.ne.s32.totalorder %s50, %s51
      %p62 = scmp.eq.s32.totalorder %s21, 0
      %p63 = por %p61, %p62
      %p64 = scmp.ne.s32.totalorder %s50, %s51
      %p65 = scmp.eq.s32.totalorder %s22, 1
      %p66 = por %p64, %p65
      %p68 = scmp.ne.s32.totalorder %s51, %s67
      %p69 = scmp.eq.s32.totalorder %s22, 0
      %p70 = por %p68, %p69
      %s71 = ssub.s32 %s16, %s23
      %p72 = scmp.eq.s32.totalorder %s71, 0
      %s74 = sadd.s32 %s73, 1
      %s75 = scalar_select %p72, %s73, %s74
      %p78 = pneg %p72
      %p79 = scmp.eq.s32.totalorder %s16, 1
      %p80 = por %p78, %p79
      %p81 = scmp.ne.s32.totalorder %s73, %s76
      %p82 = scmp.eq.s32.totalorder %s16, 0
      %p83 = por %p81, %p82
      %p84 = scmp.ne.s32.totalorder %s73, %s76
      %p85 = scmp.eq.s32.totalorder %s21, 1
      %p86 = por %p84, %p85
      %p87 = scmp.ne.s32.totalorder %s76, %s77
      %p88 = scmp.eq.s32.totalorder %s21, 0
      %p89 = por %p87, %p88
      %p90 = scmp.ne.s32.totalorder %s76, %s77
      %p91 = scmp.eq.s32.totalorder %s22, 1
      %p92 = por %p90, %p91
      %p94 = scmp.ne.s32.totalorder %s77, %s93
      %p95 = scmp.eq.s32.totalorder %s22, 0
      %p96 = por %p94, %p95
      %s97 = ssub.s32 %s16, %s23
      %p98 = scmp.eq.s32.totalorder %s97, 0
      %s100 = sadd.s32 %s99, 1
      %s101 = scalar_select %p98, %s99, %s100
      %p104 = pneg %p98
      %p105 = scmp.eq.s32.totalorder %s16, 1
      %p106 = por %p104, %p105
      %p107 = scmp.ne.s32.totalorder %s99, %s102
      %p108 = scmp.eq.s32.totalorder %s16, 0
      %p109 = por %p107, %p108
      %p110 = scmp.ne.s32.totalorder %s99, %s102
      %p111 = scmp.eq.s32.totalorder %s21, 1
      %p112 = por %p110, %p111
      %p113 = scmp.ne.s32.totalorder %s102, %s103
      %p114 = scmp.eq.s32.totalorder %s21, 0
      %p115 = por %p113, %p114
      %p116 = scmp.ne.s32.totalorder %s102, %s103
      %p117 = scmp.eq.s32.totalorder %s22, 1
      %p118 = por %p116, %p117
      %p120 = scmp.ne.s32.totalorder %s103, %s119
      %p121 = scmp.eq.s32.totalorder %s22, 0
      %p122 = por %p120, %p121
      %p123 = scmp.le.s32.totalorder 1, %s16
      %p124 = scmp.lt.s32.totalorder %s16, 3
      %p125 = pnand %p123, %p124
      %p126 = pneg %p125
      // Predicated region
      $region9: #{conv_block_forward.3} parent=5 // pred_check
        _
      $region10: #{conv_block_forward.3} parent=5 // pred_check_branch
        %128 = sbr.rel (%p125) target = $region12
      $region11: #{conv_block_forward.3} parent=5 // pred_region
        %s129 = ssub.s32 %s16, 1
        // Predicated region
        $region13: #{conv_block_forward.3} parent=11 // pred_check
          %p130 = pneg %p37
        $region14: #{conv_block_forward.3} parent=11 // pred_check_branch
          %132 = sbr.rel (%p130) target = $region16
        $region15: #{conv_block_forward.3} parent=11 // pred_region
          %s134 = ssub.s32 128, 128
          %135 = vsyncadd [#allocation3], %s134
          %s137 = sshll.u32 [#allocation2], 4
          %s138 = int_to_ptr.vmem [resolvable:$true] %s137
          %140 = dma.hbm_to_vmem [thread:$0]  %s0, 128, %s138, [#allocation3]
        $region16: #{conv_block_forward.3} parent=11 // pred_fallthru
          _
      $region12: #{conv_block_forward.3} parent=5 // pred_fallthru
        _
      %p141 = scmp.lt.s32.totalorder %s16, 2
      // Predicated region
      $region17: #{conv_block_forward.3} parent=5 // pred_check
        %p142 = pneg %p141
      $region18: #{conv_block_forward.3} parent=5 // pred_check_branch
        %144 = sbr.rel (%p142) target = $region20
      $region19: #{conv_block_forward.3} parent=5 // pred_region
        // Predicated region
        $region21: #{conv_block_forward.3} parent=19 // pred_check
          %p145 = pneg %p57
        $region22: #{conv_block_forward.3} parent=19 // pred_check_branch
          %147 = sbr.rel (%p145) target = $region24
        $region23: #{conv_block_forward.3} parent=19 // pred_region
          %s148 = sand.u32 %s16, 1
          %s149 = scalar_lea.sflag [#allocation6], %s148
          %s150 = sand.u32 %s47, 1
          %s151 = smul.addr %s150, 8
          %s152 = scalar_lea.vmem [#allocation5], %s151
          %s154 = ssub.s32 128, 128
          %155 = vsyncadd %s149, %s154
          %s156 = smul.addr %s16, 128
          %s157 = scalar_lea.hbm %s1, %s156
          %s159 = sshll.u32 %s152, 4
          %s160 = int_to_ptr.vmem [resolvable:$true] %s159
          %162 = dma.hbm_to_vmem [thread:$0]  %s157, 128, %s160, %s149
        $region24: #{conv_block_forward.3} parent=19 // pred_fallthru
          _
        // Predicated region
        $region25: #{conv_block_forward.3} parent=19 // pred_check
          %p163 = pneg %p83
        $region26: #{conv_block_forward.3} parent=19 // pred_check_branch
          %165 = sbr.rel (%p163) target = $region28
        $region27: #{conv_block_forward.3} parent=19 // pred_region
          %s166 = sand.u32 %s16, 1
          %s167 = scalar_lea.sflag [#allocation6], %s166
          %s168 = sand.u32 %s73, 1
          %s169 = smul.addr %s168, 8
          %s170 = scalar_lea.vmem [#allocation7], %s169
          %s172 = ssub.s32 128, 128
          %173 = vsyncadd %s167, %s172
          %s174 = smul.addr %s16, 128
          %s175 = scalar_lea.hbm %s2, %s174
          %s177 = sshll.u32 %s170, 4
          %s178 = int_to_ptr.vmem [resolvable:$true] %s177
          %180 = dma.hbm_to_vmem [thread:$0]  %s175, 128, %s178, %s167
        $region28: #{conv_block_forward.3} parent=19 // pred_fallthru
          _
      $region20: #{conv_block_forward.3} parent=5 // pred_fallthru
        _
      %p181 = scmp.le.s32.totalorder 1, %s16
      %p182 = scmp.lt.s32.totalorder %s16, 3
      %p183 = pnand %p181, %p182
      %p184 = pneg %p183
      // Predicated region
      $region29: #{conv_block_forward.3} parent=5 // pred_check
        _
      $region30: #{conv_block_forward.3} parent=5 // pred_check_branch
        %186 = sbr.rel (%p183) target = $region32
      $region31: #{conv_block_forward.3} parent=5 // pred_region
        %s187 = ssub.s32 %s16, 1
        // Predicated region
        $region33: #{conv_block_forward.3} parent=31 // pred_check
          %p188 = pneg %p37
        $region34: #{conv_block_forward.3} parent=31 // pred_check_branch
          %190 = sbr.rel (%p188) target = $region36
        $region35: #{conv_block_forward.3} parent=31 // pred_region
          %191 = dma.done [#allocation3], 128
        $region36: #{conv_block_forward.3} parent=31 // pred_fallthru
          _
        %s192 = sand.u32 %s21, 1
        %s193 = scalar_lea.sflag [#allocation6], %s192
        %s194 = sand.u32 %s50, 1
        %s195 = smul.addr %s194, 8
        %s196 = scalar_lea.vmem [#allocation5], %s195
        // Predicated region
        $region37: #{conv_block_forward.3} parent=31 // pred_check
          %p197 = pneg %p63
        $region38: #{conv_block_forward.3} parent=31 // pred_check_branch
          %199 = sbr.rel (%p197) target = $region40
        $region39: #{conv_block_forward.3} parent=31 // pred_region
          %200 = dma.done %s193, 128
        $region40: #{conv_block_forward.3} parent=31 // pred_fallthru
          _
        %s201 = sand.u32 %s21, 1
        %s202 = scalar_lea.sflag [#allocation6], %s201
        %s203 = sand.u32 %s76, 1
        %s204 = smul.addr %s203, 8
        %s205 = scalar_lea.vmem [#allocation7], %s204
        // Predicated region
        $region41: #{conv_block_forward.3} parent=31 // pred_check
          %p206 = pneg %p89
        $region42: #{conv_block_forward.3} parent=31 // pred_check_branch
          %208 = sbr.rel (%p206) target = $region44
        $region43: #{conv_block_forward.3} parent=31 // pred_region
          %209 = dma.done %s202, 128
        $region44: #{conv_block_forward.3} parent=31 // pred_fallthru
          _
        %p210 = pneg %p37
        %p211 = pneg %p34
        %s212 = sand.u32 %s21, 1
        %s213 = scalar_lea.sflag [#allocation6], %s212
        %s214 = sand.u32 %s50, 1
        %s215 = smul.addr %s214, 8
        %s216 = scalar_lea.vmem [#allocation5], %s215
        %p217 = pneg %p63
        %p218 = pneg %p60
        %s219 = sand.u32 %s21, 1
        %s220 = scalar_lea.sflag [#allocation6], %s219
        %s221 = sand.u32 %s76, 1
        %s222 = smul.addr %s221, 8
        %s223 = scalar_lea.vmem [#allocation7], %s222
        %p224 = pneg %p89
        %p225 = pneg %p86
        %p226 = pneg %p115
        %p227 = pneg %p112
        %s228 = sand.u32 %s102, 1
        %s229 = scalar_lea.sflag [#allocation4], %s228
        %s230 = sand.u32 %s102, 1
        %s231 = smul.addr %s230, 8
        %s232 = scalar_lea.vmem [#allocation8], %s231
        %v233 = vld [vmem:[#allocation2] sm:$0xff]
        %v234 = vld [vmem:[%s196] sm:$0xff]
        %236 = vset.pattern.permute.xlu0 0
        %237 = vperm.xlu0 %236, %v233
        %v238 = vpop.permute.xlu0 %237
        %v240 = vmul.f32 %v234, %v238
        %241 = vset.pattern.permute.xlu0 1
        %242 = vperm.xlu0 %241, %v233
        %v243 = vpop.permute.xlu0 %242
        %v245 = vadd.f32 %v240, %v243
        %v246 = vld [vmem:[%s205] sm:$0xff]
        %v247 = vmul.f32 %v246, %v238
        %v248 = vadd.f32 %v247, %v243
        %vm249 = vcmp.gt.f32.partialorder %v245, 0.0
        %v250 = vmul.f32 %v245, 0.01
        %v251 = vsel %vm249, %v245, %v250
        %vm252 = vcmp.gt.f32.partialorder %v248, 0.0
        %v253 = vmul.f32 %v248, 0.01
        %v254 = vsel %vm252, %v248, %v253
        %v255 = vadd.f32 %v251, %v254
        %v256 = vmul.f32 %v255, 0.5
        %257 = vst [vmem:[%s232] sm:$0xff] %v256
        %s258 = sand.u32 %s102, 1
        %s259 = scalar_lea.sflag [#allocation4], %s258
        %s260 = sand.u32 %s102, 1
        %s261 = smul.addr %s260, 8
        %s262 = scalar_lea.vmem [#allocation8], %s261
        // Predicated region
        $region45: #{conv_block_forward.3} parent=31 // pred_check
          %p263 = pneg %p112
        $region46: #{conv_block_forward.3} parent=31 // pred_check_branch
          %265 = sbr.rel (%p263) target = $region48
        $region47: #{conv_block_forward.3} parent=31 // pred_region
          %s267 = ssub.s32 128, 128
          %268 = vsyncadd %s259, %s267
          %s269 = smul.addr %s21, 128
          %s270 = scalar_lea.hbm %s3, %s269
          %s272 = sshll.u32 %s262, 4
          %s273 = int_to_ptr.vmem [resolvable:$true] %s272
          %275 = dma.vmem_to_hbm [thread:$0]  %s273, 128, %s270, %s259
        $region48: #{conv_block_forward.3} parent=31 // pred_fallthru
          _
      $region32: #{conv_block_forward.3} parent=5 // pred_fallthru
        _
      %p276 = scmp.le.s32.totalorder 2, %s16
      // Predicated region
      $region49: #{conv_block_forward.3} parent=5 // pred_check
        %p277 = pneg %p276
      $region50: #{conv_block_forward.3} parent=5 // pred_check_branch
        %279 = sbr.rel (%p277) target = $region52
      $region51: #{conv_block_forward.3} parent=5 // pred_region
        %s280 = ssub.s32 %s16, 2
        // Predicated region
        $region53: #{conv_block_forward.3} parent=51 // pred_check
          %p281 = pneg %p118
        $region54: #{conv_block_forward.3} parent=51 // pred_check_branch
          %283 = sbr.rel (%p281) target = $region56
        $region55: #{conv_block_forward.3} parent=51 // pred_region
          %s284 = sand.u32 %s103, 1
          %s285 = scalar_lea.sflag [#allocation4], %s284
          %s286 = sand.u32 %s103, 1
          %s287 = smul.addr %s286, 8
          %s288 = scalar_lea.vmem [#allocation8], %s287
          %289 = dma.done %s285, 128
        $region56: #{conv_block_forward.3} parent=51 // pred_fallthru
          _
      $region52: #{conv_block_forward.3} parent=5 // pred_fallthru
        _
    $region6: #{conv_block_forward.3} parent=1 // loop_footer
      %s20 = sadd.s32 1, %s16
    $region7: #{conv_block_forward.3} parent=1 // loop_footer_branch
      %15 = sbr.rel target = $region3
    $region8: #{conv_block_forward.3} parent=1 // loop_exit
      _
    %290 = vsyncpa [#allocation3], 1
    %s291 = scalar_lea.sflag [#allocation3], 1
    %292 = vsyncpa %s291, 1
    %293 = vsyncpa [#allocation6], 1
    %s294 = scalar_lea.sflag [#allocation6], 1
    %295 = vsyncpa %s294, 1
    %296 = vsyncpa [#allocation4], 1
    %s297 = scalar_lea.sflag [#allocation4], 1
    %298 = vsyncpa %s297, 1

</llo_original>
